<compile_context>
chip_gen: v7x
topology: tpu7x:2x2x1
jax: 0.10.0
libtpu: 0.0.40
codegen_flags: <defaults>
</compile_context>

<pallas_src>
import functools

import jax
import jax.numpy as jnp
from jax import lax
from jax.experimental import pallas as pl
from jax.experimental.pallas import tpu as pltpu


def _round_up(x, m):
    return ((x + m - 1) // m) * m


def _vmem_capacity_bytes():
    """Physical VMEM per TensorCore; conservative fallback if query fails."""
    try:
        return int(pltpu.get_tpu_info().vmem_capacity_bytes)
    except Exception:
        return 128 * 1024 * 1024


def _focal_pow(base, gamma):
    """(1 - pt) ** gamma. Integer gamma -> repeated VPU multiplies."""
    if float(gamma) == int(gamma) and 0 <= int(gamma) <= 8:
        g = int(gamma)
        if g == 0:
            return jnp.ones_like(base)
        out = base
        for _ in range(g - 1):
            out = out * base
        return out
    # non-integer gamma: clamp base to avoid NaN, pay the EUP pow.
    return jnp.maximum(base, 0.0) ** gamma


def _row_losses(logits, targets, alpha, gamma):
    """Per-row focal loss. logits (T, C) f32, targets (T, 1) i32.

    Returns (loss (T, 1), onehot (T, C))."""
    _, c = logits.shape
    # numerically stable log-sum-exp
    m = jnp.max(logits, axis=-1, keepdims=True)                        # (T, 1)
    lse = m + jnp.log(jnp.sum(jnp.exp(logits - m), axis=-1,
                              keepdims=True))                          # (T, 1)
    # single (1, C) class iota; the compare broadcasts it across sublanes
    col = lax.broadcasted_iota(jnp.int32, (1, c), 1)                   # (1, C)
    onehot = col == targets                                            # (T, C)
    tgt_logit = jnp.sum(jnp.where(onehot, logits, 0.0), axis=-1,
                        keepdims=True)                                 # (T, 1)
    # mathematically lse >= tgt_logit; clamp fp rounding noise
    ce = jnp.maximum(lse - tgt_logit, 0.0)                             # (T, 1)
    pt = jnp.exp(-ce)
    return alpha * _focal_pow(1.0 - pt, gamma) * ce, onehot


def _focal_partial_sum_kernel(x_ref, t_ref, o_ref, *, alpha, gamma, n_total,
                              tile_n):
    """One grid step: masked per-tile partial sum -> lane-dense (1,1,128)."""
    i = pl.program_id(0)
    logits = x_ref[...].astype(jnp.float32)
    f_loss, _ = _row_losses(logits, t_ref[...], alpha, gamma)          # (T, 1)
    # mask garbage rows of the (partial) last tile; where() never propagates
    # NaN/Inf from the unselected branch.
    row = i * tile_n + lax.broadcasted_iota(jnp.int32, (tile_n, 1), 0)
    part = jnp.sum(jnp.where(row < n_total, f_loss, 0.0))              # scalar
    o_ref[...] = jnp.full((1, 1, 128), part, dtype=jnp.float32)


def _focal_none_kernel(x_ref, t_ref, o_ref, *, alpha, gamma):
    """reduction='none': per-row losses written lane-dense as (1, 1, T)."""
    logits = x_ref[...].astype(jnp.float32)
    t, c = logits.shape
    f_loss, onehot = _row_losses(logits, t_ref[...], alpha, gamma)     # (T, 1)
    # Relayout the (T, 1) sublane-major column onto lanes using the idle MXU:
    #   out[0, t] = sum_c onehot[t, c] * f_loss[t]   (exactly one 1 per row)
    contrib = jnp.where(onehot, f_loss, 0.0)                           # (T, C)
    ones_row = jnp.ones((1, c), jnp.float32)
    loss_lane = lax.dot_general(                                       # (1, T)
        ones_row, contrib,
        dimension_numbers=(((1,), (1,)), ((), ())),                    # A @ B^T
        precision=lax.Precision.HIGHEST,
        preferred_element_type=jnp.float32)
    o_ref[...] = loss_lane.reshape(1, 1, t)


def _generation_budgets():
    cap = _vmem_capacity_bytes()
    if cap <= 64 * 1024 * 1024:        # v7x-class: 64 MiB VMEM per TensorCore
        return 4 * 1024 * 1024, 32 * 1024 * 1024
    return 8 * 1024 * 1024, 64 * 1024 * 1024     # v5e / v6e: 128 MiB physical


def _pick_tile_n(n, c, itemsize, budget):
    c_pad = _round_up(c, 128)
    # double-buffered logits tile + lane-padded (TILE_N, 1) i32 targets tile
    per_row = 2 * (c_pad * itemsize + 128 * 4)
    rows = budget // per_row
    row_cap = 8192 if c <= 256 else 2048     # small C: move >= 2-4 MiB / step
    rows = max(128, min(row_cap, (rows // 128) * 128))
    return int(min(rows, _round_up(n, 8)))


def _vmem_limit_bytes(tile_n, c, itemsize, cap):
    c_pad = _round_up(c, 128)
    logits_buf = tile_n * c_pad * itemsize
    targets_buf = tile_n * 128 * 4             # (TILE_N, 1) i32, lane padded
    out_buf = 8 * _round_up(tile_n, 128) * 4   # lane-dense out block, sublane pad
    pipeline = 2 * (logits_buf + targets_buf + out_buf)    # double-buffered
    temps = 4 * tile_n * c_pad * 4             # f32 copy, exp, onehot, contrib
    return int(min(cap, max(16 * 1024 * 1024, pipeline + temps + (4 << 20))))


def focal_loss(inputs, targets, *, alpha=0.25, gamma=2.0, reduction="mean",
               tile_n=None):
    """inputs: (N, C) float logits; targets: (N,) int class indices in [0, C)."""
    n, c = inputs.shape
    targets2d = targets.astype(jnp.int32).reshape(n, 1)
    itemsize = inputs.dtype.itemsize

    budget, vmem_cap = _generation_budgets()
    if tile_n is None:
        tile_n = _pick_tile_n(n, c, itemsize, budget)
    assert tile_n % 8 == 0, "tile_n must be a multiple of 8 (sublane tiling)"

    num_tiles = pl.cdiv(n, tile_n)             # ragged last tile: no jnp.pad
    vmem_limit = _vmem_limit_bytes(tile_n, c, itemsize, vmem_cap)

    in_specs = [
        pl.BlockSpec((tile_n, c), lambda i: (i, 0)),
        pl.BlockSpec((tile_n, 1), lambda i: (i, 0)),
    ]
    compiler_params = pltpu.CompilerParams(
        dimension_semantics=("parallel",), vmem_limit_bytes=vmem_limit)
    # advisory cost for XLA scheduling around the custom call
    cost = pl.CostEstimate(
        flops=12 * n * c,
        transcendentals=n * c + 3 * n,
        bytes_accessed=itemsize * n * c + 4 * n + 4 * n + 512 * num_tiles,
    )

    if reduction in ("mean", "sum"):
        kernel = functools.partial(
            _focal_partial_sum_kernel, alpha=float(alpha), gamma=float(gamma),
            n_total=n, tile_n=tile_n)
        parts = pl.pallas_call(
            kernel,
            out_shape=jax.ShapeDtypeStruct((num_tiles, 1, 128), jnp.float32),
            grid_spec=pltpu.PrefetchScalarGridSpec(
                num_scalar_prefetch=0,
                grid=(num_tiles,),
                in_specs=in_specs,
                out_specs=pl.BlockSpec((1, 1, 128), lambda i: (i, 0, 0)),
            ),
            compiler_params=compiler_params,
            cost_estimate=cost,
        )(inputs, targets2d)
        total = jnp.sum(parts[:, 0, 0])        # tiny stage-2 reduce in XLA
        if reduction == "mean":
            return total / jnp.float32(n)
        return total

    if reduction == "none":
        kernel = functools.partial(
            _focal_none_kernel, alpha=float(alpha), gamma=float(gamma))
        out = pl.pallas_call(
            kernel,
            out_shape=jax.ShapeDtypeStruct((num_tiles, 1, tile_n), jnp.float32),
            grid_spec=pltpu.PrefetchScalarGridSpec(
                num_scalar_prefetch=0,
                grid=(num_tiles,),
                in_specs=in_specs,
                out_specs=pl.BlockSpec((1, 1, tile_n), lambda i: (i, 0, 0)),
            ),
            compiler_params=compiler_params,
            cost_estimate=cost,
        )(inputs, targets2d)
        # garbage lanes of the ragged last tile sit past index n; slice them off
        return out.reshape(num_tiles * tile_n)[:n]

    raise ValueError(f"unknown reduction: {reduction!r}")


if __name__ == "__main__":
    key = jax.random.PRNGKey(0)
    k1, k2 = jax.random.split(key)

    def ref_loss(x, t, alpha=0.25, gamma=2.0, reduction="mean"):
        lse = jax.scipy.special.logsumexp(x, axis=-1)
        ce = lse - jnp.take_along_axis(x, t[:, None], axis=-1)[:, 0]
        pt = jnp.exp(-ce)
        fl = alpha * (1.0 - pt) ** gamma * ce
        if reduction == "mean":
            return jnp.mean(fl)
        if reduction == "sum":
            return jnp.sum(fl)
        return fl

    # 1) small single-tile case, default (generation-aware) tiling
    N, C = 16, 32
    logits = jax.random.normal(k1, (N, C), dtype=jnp.float32)
    targets = jax.random.randint(k2, (N,), 0, C, dtype=jnp.int32)
    loss = focal_loss(logits, targets, alpha=0.25, gamma=2.0, reduction="mean")
    jax.block_until_ready(loss)
    assert jnp.allclose(loss, ref_loss(logits, targets), rtol=1e-5, atol=1e-5), \
        (loss, ref_loss(logits, targets))

    # 2) ragged multi-tile (N=20, tile_n=8 -> 3 tiles, last one partial) with
    #    no wrapper-side padding: masked rows (reduce) / sliced tail (none)
    N2 = 20
    logits2 = jax.random.normal(k1, (N2, C), dtype=jnp.float32)
    targets2 = jax.random.randint(k2, (N2,), 0, C, dtype=jnp.int32)

    loss_mean = focal_loss(logits2, targets2, tile_n=8)
    jax.block_until_ready(loss_mean)
    assert jnp.allclose(loss_mean, ref_loss(logits2, targets2),
                        rtol=1e-5, atol=1e-5), \
        (loss_mean, ref_loss(logits2, targets2))

    loss_sum = focal_loss(logits2, targets2, reduction="sum", tile_n=8)
    jax.block_until_ready(loss_sum)
    assert jnp.allclose(loss_sum, ref_loss(logits2, targets2, reduction="sum"),
                        rtol=1e-5, atol=1e-5)

    loss_none = focal_loss(logits2, targets2, reduction="none", tile_n=8)
    jax.block_until_ready(loss_none)
    assert loss_none.shape == (N2,)
    # MXU (HIGHEST precision) relayout is ~bf16x3 accurate -> slightly looser rtol
    assert jnp.allclose(loss_none, ref_loss(logits2, targets2, reduction="none"),
                        rtol=1e-4, atol=1e-5)

    # 3) larger ragged case (N=300, C=40, tile_n=128 -> 3 tiles, last has 44 rows)
    N3, C3 = 300, 40
    logits3 = jax.random.normal(k1, (N3, C3), dtype=jnp.float32)
    targets3 = jax.random.randint(k2, (N3,), 0, C3, dtype=jnp.int32)

    loss3 = focal_loss(logits3, targets3, tile_n=128)
    jax.block_until_ready(loss3)
    assert jnp.allclose(loss3, ref_loss(logits3, targets3), rtol=1e-5, atol=1e-5)

    none3 = focal_loss(logits3, targets3, reduction="none", tile_n=128)
    jax.block_until_ready(none3)
    assert none3.shape == (N3,)
    assert jnp.allclose(none3, ref_loss(logits3, targets3, reduction="none"),
                        rtol=1e-4, atol=1e-5)

    print("KERNEL_OK")
</pallas_src>

<mosaic_0001>
module attributes {stable_mosaic.version = 11 : i64} {
  func.func @_focal_partial_sum_kernel(%arg0: i32, %arg1: memref<16x32xf32, #tpu.memory_space<vmem>>, %arg2: memref<16x1xi32, #tpu.memory_space<vmem>>, %arg3: memref<1x1x128xf32, #tpu.memory_space<vmem>>) attributes {dimension_semantics = [#tpu.dimension_semantics<parallel>], iteration_bounds = array<i64: 1>, scalar_prefetch = 0 : i64, scratch_operands = 0 : i64, tpu.core_type = #tpu.core_type<tc>, window_params = [{transform_indices = @transform_0, window_bounds = array<i64: 16, 32>}, {transform_indices = @transform_1, window_bounds = array<i64: 16, 1>}, {transform_indices = @transform_2, window_bounds = array<i64: 1, 1, 128>}]} {
    %c0 = arith.constant 0 : index
    %c0_0 = arith.constant 0 : index
    %0 = vector.load %arg1[%c0, %c0_0] : memref<16x32xf32, #tpu.memory_space<vmem>>, vector<16x32xf32>
    %c0_1 = arith.constant 0 : index
    %c0_2 = arith.constant 0 : index
    %1 = vector.load %arg2[%c0_1, %c0_2] : memref<16x1xi32, #tpu.memory_space<vmem>>, vector<16x1xi32>
    %cst = arith.constant dense<0xFF800000> : vector<16xf32>
    %2 = vector.multi_reduction <maximumf>, %0, %cst [1] : vector<16x32xf32> to vector<16xf32>
    %3 = vector.shape_cast %2 : vector<16xf32> to vector<16x1xf32>
    %4 = vector.broadcast %3 : vector<16x1xf32> to vector<16x32xf32>
    %5 = arith.subf %0, %4 : vector<16x32xf32>
    %6 = math.exp %5 : vector<16x32xf32>
    %cst_3 = arith.constant dense<0.000000e+00> : vector<16xf32>
    %7 = vector.multi_reduction <add>, %6, %cst_3 [1] : vector<16x32xf32> to vector<16xf32>
    %8 = vector.shape_cast %7 : vector<16xf32> to vector<16x1xf32>
    %9 = math.log %8 : vector<16x1xf32>
    %10 = arith.addf %3, %9 : vector<16x1xf32>
    %11 = tpu.iota {dimensions = array<i32: 1>} : vector<1x32xi32>
    %12 = vector.broadcast %11 : vector<1x32xi32> to vector<16x32xi32>
    %13 = vector.broadcast %1 : vector<16x1xi32> to vector<16x32xi32>
    %14 = arith.cmpi eq, %12, %13 : vector<16x32xi32>
    %cst_4 = arith.constant 0.000000e+00 : f32
    %15 = vector.broadcast %cst_4 : f32 to vector<16x32xf32>
    %16 = arith.select %14, %0, %15 : vector<16x32xi1>, vector<16x32xf32>
    %cst_5 = arith.constant dense<0.000000e+00> : vector<16xf32>
    %17 = vector.multi_reduction <add>, %16, %cst_5 [1] : vector<16x32xf32> to vector<16xf32>
    %18 = vector.shape_cast %17 : vector<16xf32> to vector<16x1xf32>
    %19 = arith.subf %10, %18 : vector<16x1xf32>
    %cst_6 = arith.constant 0.000000e+00 : f32
    %20 = vector.broadcast %cst_6 : f32 to vector<16x1xf32>
    %21 = arith.maximumf %19, %20 : vector<16x1xf32>
    %cst_7 = arith.constant 0.000000e+00 : f32
    %22 = vector.broadcast %cst_7 : f32 to vector<16x1xf32>
    %23 = arith.subf %22, %21 : vector<16x1xf32>
    %24 = math.exp %23 : vector<16x1xf32>
    %cst_8 = arith.constant 1.000000e+00 : f32
    %25 = vector.broadcast %cst_8 : f32 to vector<16x1xf32>
    %26 = arith.subf %25, %24 : vector<16x1xf32>
    %27 = arith.mulf %26, %26 : vector<16x1xf32>
    %cst_9 = arith.constant 2.500000e-01 : f32
    %28 = vector.broadcast %cst_9 : f32 to vector<16x1xf32>
    %29 = arith.mulf %28, %27 : vector<16x1xf32>
    %30 = arith.mulf %29, %21 : vector<16x1xf32>
    %c16_i32 = arith.constant 16 : i32
    %31 = arith.muli %arg0, %c16_i32 : i32
    %32 = tpu.iota {dimensions = array<i32: 0>} : vector<16x1xi32>
    %33 = vector.broadcast %31 : i32 to vector<16x1xi32>
    %34 = arith.addi %33, %32 : vector<16x1xi32>
    %c16_i32_10 = arith.constant 16 : i32
    %35 = vector.broadcast %c16_i32_10 : i32 to vector<16x1xi32>
    %36 = arith.cmpi slt, %34, %35 : vector<16x1xi32>
    %cst_11 = arith.constant 0.000000e+00 : f32
    %37 = vector.broadcast %cst_11 : f32 to vector<16x1xf32>
    %38 = arith.select %36, %30, %37 : vector<16x1xi1>, vector<16x1xf32>
    %39 = vector.shape_cast %38 : vector<16x1xf32> to vector<1x16x1xf32>
    %cst_12 = arith.constant dense<0.000000e+00> : vector<1xf32>
    %40 = vector.multi_reduction <add>, %39, %cst_12 [1, 2] : vector<1x16x1xf32> to vector<1xf32>
    %41 = vector.shape_cast %40 : vector<1xf32> to vector<1x1x1xf32>
    %42 = vector.extract %41[0, 0, 0] : f32 from vector<1x1x1xf32>
    %43 = vector.broadcast %42 : f32 to vector<1x1x128xf32>
    %c0_13 = arith.constant 0 : index
    %c0_14 = arith.constant 0 : index
    %c0_15 = arith.constant 0 : index
    %44 = vector.load %arg3[%c0_13, %c0_14, %c0_15] : memref<1x1x128xf32, #tpu.memory_space<vmem>>, vector<1x1x128xf32>
    tpu.vector_store %arg3[%c0_13, %c0_14, %c0_15], %43 {strides = array<i32>} : memref<1x1x128xf32, #tpu.memory_space<vmem>>, vector<1x1x128xf32>,
    return
  }
  func.func @transform_0(%arg0: i32) -> (i32, i32) {
    %c0_i32 = arith.constant 0 : i32
    %c0_i32_0 = arith.constant 0 : i32
    return %arg0, %c0_i32 : i32, i32
  }
  func.func @transform_1(%arg0: i32) -> (i32, i32) {
    %c0_i32 = arith.constant 0 : i32
    %c0_i32_0 = arith.constant 0 : i32
    return %arg0, %c0_i32 : i32, i32
  }
  func.func @transform_2(%arg0: i32) -> (i32, i32, i32) {
    %c0_i32 = arith.constant 0 : i32
    %c0_i32_0 = arith.constant 0 : i32
    %c0_i32_1 = arith.constant 0 : i32
    return %arg0, %c0_i32, %c0_i32_0 : i32, i32, i32
  }
}

</mosaic_0001>

<llo_original>
// kernel: tpu_custom_call.1
$region0: #{tpu_custom_call.1}
  #allocation0 [shape = 'u32[]', space=smem, size = 0x4, offset = 0x4, fixed_abs, tag = 'smem constant byte address 0x4 - core index']
  #allocation1 [shape = 'u32[144,128]{1,0:T(1,128)}', space=vmem, size = 0x12000, scoped, tag = 'internal scratch']
  %s0 = inlined_call_operand.vmem [shape: f32[16,32], index: 0, kind: input, shape index: {}]
  %s1 = inlined_call_operand.vmem [shape: s32[16,1], index: 1, kind: input, shape index: {}]
  %s2 = inlined_call_operand.hbm [shape: f32[1,1,128], index: 2, kind: output, shape index: {}]
  %s3 = sld [smem:[#allocation0]]
  $region18: #{tpu_custom_call.1} parent=0
    _
  %s5 = ssub.s32 1, %s3
  %s6 = scalar_select 0, %s5, %s3
  $region1: #{tpu_custom_call.1} parent=0
    #allocation2 [shape = 'u8[512]{0}', space=vmem, size = 0x400, scoped, tag = 'output window, operand 0, single buffered']
    #allocation3 [shape = 's32[1]{0}', space=sflag, size = 0x4, scoped, tag = 'scoped memory for tpu_custom_call.1']
    %7 = vsyncpa [#allocation3], 0
    // Predicated region
    $region2: #{tpu_custom_call.1} parent=1 // pred_check
      _
    $region3: #{tpu_custom_call.1} parent=1 // pred_check_branch
      %9 = sbr.rel (0) target = $region5
    $region4: #{tpu_custom_call.1} parent=1 // pred_region
      _
    $region5: #{tpu_custom_call.1} parent=1 // pred_fallthru
      _
    // Predicated region
    $region6: #{tpu_custom_call.1} parent=1 // pred_check
      _
    $region7: #{tpu_custom_call.1} parent=1 // pred_check_branch
      %11 = sbr.rel (0) target = $region9
    $region8: #{tpu_custom_call.1} parent=1 // pred_region
      _
    $region9: #{tpu_custom_call.1} parent=1 // pred_fallthru
      _
    %v12 = vld [vmem:[%s0] sm:$0xff]
    %v13 = vld [vmem:[%s0 + $0x8] sm:$0xff]
    %v14 = vld [vmem:[%s1] sm:$0xff]
    %v15 = vld [vmem:[%s1 + $0x8] sm:$0xff]
    %vm16 = vcmask 261120
    %v17 = vsel %vm16, %v12, -inf
    %18 = vmax.xlane.f32.xlu0 %v17
    %v19 = vpop.xlane.xlu0 %18
    %v20 = vsel %vm16, %v13, -inf
    %21 = vmax.xlane.f32.xlu0 %v20
    %v22 = vpop.xlane.xlu0 %21
    %v23 = vsub.f32 %v12, %v19
    %v24 = vsub.f32 %v13, %v22
    %v25 = vmul.f32 %v23, 1.442695
    %v26 = vpow.pop %v25
    %v27 = vmul.f32 %v24, 1.442695
    %v28 = vpow.pop %v27
    %v29 = vsel %vm16, %v26, 0.0
    %30 = vadd.xlane.f32.xlu0 %v29
    %v31 = vpop.xlane.xlu0 %30
    %v32 = vsel %vm16, %v28, 0.0
    %33 = vadd.xlane.f32.xlu0 %v32
    %v34 = vpop.xlane.xlu0 %33
    %v35 = vlog2.pop %v31
    %v36 = vmul.f32 %v35, 0.6931472
    %v37 = vlog2.pop %v34
    %v38 = vmul.f32 %v37, 0.6931472
    %v39 = vadd.f32 %v19, %v36
    %v40 = vadd.f32 %v22, %v38
    %v41 = vlaneseq
    %v42 = vand.u32 %v41, 127
    %43 = vset.pattern.permute.xlu0 0
    %44 = vperm.xlu0 %43, %v14
    %v45 = vpop.permute.xlu0 %44
    %46 = vset.pattern.permute.xlu0 0
    %47 = vperm.xlu0 %46, %v15
    %v48 = vpop.permute.xlu0 %47
    %vm49 = vcmp.eq.s32.totalorder %v42, %v45
    %vm50 = vcmp.eq.s32.totalorder %v42, %v48
    %v51 = vsel %vm49, %v12, 0.0
    %v52 = vsel %vm50, %v13, 0.0
    %v53 = vsel %vm16, %v51, 0.0
    %54 = vadd.xlane.f32.xlu0 %v53
    %v55 = vpop.xlane.xlu0 %54
    %v56 = vsel %vm16, %v52, 0.0
    %57 = vadd.xlane.f32.xlu0 %v56
    %v58 = vpop.xlane.xlu0 %57
    %v59 = vsub.f32 %v39, %v55
    %v60 = vsub.f32 %v40, %v58
    %v61 = vmax.f32 %v59, 0.0
    %v62 = vmax.f32 %v60, 0.0
    %v63 = vsub.f32 0.0, %v61
    %v64 = vsub.f32 0.0, %v62
    %v65 = vmul.f32 %v63, 1.442695
    %v66 = vpow.pop %v65
    %v67 = vmul.f32 %v64, 1.442695
    %v68 = vpow.pop %v67
    %v69 = vsub.f32 1.0, %v66
    %v70 = vsub.f32 1.0, %v68
    %v71 = vmul.f32 %v69, %v69
    %v72 = vmul.f32 %v70, %v70
    %v73 = vmul.f32 %v71, 0.25
    %v74 = vmul.f32 %v72, 0.25
    %v75 = vmul.f32 %v73, %v61
    %v76 = vmul.f32 %v74, %v62
    %s77 = smul.u32 0, 16
    %v78 = vlaneseq
    %v79 = vshrl.u32 %v78, 7
    %v80 = vadd.s32 %v79, 8
    %v81 = vstv %s77
    %v82 = vadd.s32 %v81, %v79
    %v83 = vadd.s32 %v81, %v80
    %vm84 = vcmp.lt.s32.totalorder %v82, 16
    %vm85 = vcmp.lt.s32.totalorder %v83, 16
    %v86 = vsel %vm84, %v75, 0.0
    %v87 = vsel %vm85, %v76, 0.0
    %vm88 = vcmask 7168
    %v89 = vsel %vm88, %v86, 0.0
    %v90 = vsel %vm88, %v87, 0.0
    %v91 = vadd.f32 %v89, %v90
    %92 = vadd.xlane.f32.xlu0 %v91
    %v93 = vpop.xlane.xlu0 %92
    %v94 = vrot.slane %v93, 4
    %v95 = vadd.f32 %v93, %v94
    %v96 = vrot.slane %v95, 2
    %v97 = vadd.f32 %v95, %v96
    %v98 = vrot.slane %v97, 1
    %v99 = vadd.f32 %v97, %v98
    %s100 = vtos %v99
    %v101 = vstv %s100
    %102 = vst [vmem:[#allocation2] sm:$0x1] %v101
    // Predicated region
    $region10: #{tpu_custom_call.1} parent=1 // pred_check
      _
    $region11: #{tpu_custom_call.1} parent=1 // pred_check_branch
      %104 = sbr.rel (0) target = $region13
    $region12: #{tpu_custom_call.1} parent=1 // pred_region
      %s106 = ssub.s32 16, 16
      %107 = vsyncadd [#allocation3], %s106
      %s109 = sshll.u32 [#allocation2], 4
      %s110 = int_to_ptr.vmem [resolvable:$true] %s109
      %112 = dma.vmem_to_hbm [thread:$0]  %s110, 16, %s2, [#allocation3]
    $region13: #{tpu_custom_call.1} parent=1 // pred_fallthru
      _
    // Predicated region
    $region14: #{tpu_custom_call.1} parent=1 // pred_check
      _
    $region15: #{tpu_custom_call.1} parent=1 // pred_check_branch
      %114 = sbr.rel (0) target = $region17
    $region16: #{tpu_custom_call.1} parent=1 // pred_region
      %115 = dma.done [#allocation3], 16
    $region17: #{tpu_custom_call.1} parent=1 // pred_fallthru
      _
    %116 = vsyncpa [#allocation3], 1

</llo_original>
